<compile_context>
chip_gen: v6e
topology: v6e:2x2x1
jax: 0.10.0
libtpu: 0.0.40
codegen_flags: <defaults>
</compile_context>

<pallas_src>
import functools

import jax
import jax.numpy as jnp
from jax.experimental import pallas as pl
from jax.experimental.pallas import tpu as pltpu


def _round_up(x, m):
    return ((x + m - 1) // m) * m


def _vmem_capacity_bytes():
    """Per-core VMEM capacity (generation aware), with a conservative fallback."""
    try:
        return int(pltpu.get_tpu_info().vmem_capacity_bytes)
    except Exception:
        return 64 << 20  # v7x per-TC capacity; conservative for v5e/v6e (128 MiB)


# --------------------------------------------------------------------------- #
# Kernels
# --------------------------------------------------------------------------- #
def _embedding_onehot_kernel(idx_ref, table_ref, out_ref):
    # idx_ref:   (TB, 1) int32 tile of indices (pipelined VMEM tile).
    # table_ref: (n_domains, dim_p) whole table, VMEM-resident (single buffer).
    # out_ref:   (TB, dim_p) output tile (lane-dense, unmasked stores).
    idx = idx_ref[...]                                    # (TB, 1) int32
    tb = idx.shape[0]
    n_domains = table_ref.shape[0]
    iota = jax.lax.broadcasted_iota(jnp.int32, (tb, n_domains), 1)
    onehot = (iota == idx).astype(table_ref.dtype)        # exact 0/1 rows
    out_ref[...] = jnp.dot(
        onehot, table_ref[...], preferred_element_type=jnp.float32
    ).astype(out_ref.dtype)


def _embedding_row_gather_kernel(idx_ref, row_ref, out_ref):
    # idx_ref: scalar-prefetch SMEM indices (consumed by the index_maps).
    # row_ref / out_ref: (1, 1, dim_p) — copy the gathered row through VMEM.
    del idx_ref
    out_ref[...] = row_ref[...]


# --------------------------------------------------------------------------- #
# pallas_call builders
# --------------------------------------------------------------------------- #
def _onehot_lookup(idx2d, table, tb, vmem_limit):
    b_p = idx2d.shape[0]
    n_domains, dim_p = table.shape
    grid_spec = pltpu.PrefetchScalarGridSpec(
        num_scalar_prefetch=0,
        grid=(b_p // tb,),
        in_specs=[
            # Per-step tile of indices.
            pl.BlockSpec((tb, 1), lambda i: (i, 0)),
            # Whole table, single VMEM buffer, DMA'd once (no double buffering).
            pl.BlockSpec(memory_space=pltpu.MemorySpace.VMEM),
        ],
        out_specs=pl.BlockSpec((tb, dim_p), lambda i: (i, 0)),
    )
    return pl.pallas_call(
        _embedding_onehot_kernel,
        out_shape=jax.ShapeDtypeStruct((b_p, dim_p), table.dtype),
        grid_spec=grid_spec,
        compiler_params=pltpu.CompilerParams(
            dimension_semantics=("parallel",),
            vmem_limit_bytes=vmem_limit,
        ),
    )(idx2d, table)


def _row_gather_lookup(indices, table):
    """HBM-resident fallback: scalar-prefetch indices drive a per-row gather."""
    b = indices.shape[0]
    n_domains, dim_p = table.shape
    table3 = table.reshape(n_domains, 1, dim_p)
    grid_spec = pltpu.PrefetchScalarGridSpec(
        num_scalar_prefetch=1,
        grid=(b,),
        in_specs=[
            # Data-dependent row block: only the needed rows are DMA'd.
            pl.BlockSpec((1, 1, dim_p), lambda i, idx: (idx[i], 0, 0)),
        ],
        out_specs=pl.BlockSpec((1, 1, dim_p), lambda i, idx: (i, 0, 0)),
    )
    out3 = pl.pallas_call(
        _embedding_row_gather_kernel,
        out_shape=jax.ShapeDtypeStruct((b, 1, dim_p), table.dtype),
        grid_spec=grid_spec,
        compiler_params=pltpu.CompilerParams(
            dimension_semantics=("arbitrary",),
            vmem_limit_bytes=int(min(8 << 20, _vmem_capacity_bytes())),
        ),
    )(indices, table3)
    return out3.reshape(b, dim_p)


# --------------------------------------------------------------------------- #
# Dispatcher
# --------------------------------------------------------------------------- #
@functools.partial(
    jax.jit, static_argnames=("tb", "out_dim", "force_row_gather")
)
def domain_embedding_lookup(
    indices, table, *, tb=512, out_dim=None, force_row_gather=False
):
    """Pallas embedding lookup: out[i, :] = table[indices[i], :out_dim]."""
    assert indices.ndim == 1 and table.ndim == 2
    b = indices.shape[0]
    n_domains, table_dim = table.shape
    out_dim = table_dim if out_dim is None else out_dim
    indices = indices.astype(jnp.int32)

    # Lane-dense feature dim.  DomainEmbedding pre-pads the table at init, so
    # this branch is a no-op on the hot path (kept for ad-hoc callers).
    dim_p = _round_up(table_dim, 128)
    if dim_p != table_dim:
        table = jnp.pad(table, ((0, 0), (0, dim_p - table_dim)))

    itemsize = jnp.dtype(table.dtype).itemsize
    vmem_cap = _vmem_capacity_bytes()
    resident_budget = int(vmem_cap * 0.6)  # headroom for pipeline bufs / scratch

    # Batch tile: multiple of 8, never larger than the (rounded) batch.
    tb = max(8, min(_round_up(tb, 8), _round_up(b, 8)))
    b_p = _round_up(b, tb)

    vmem_needed = (
        n_domains * dim_p * itemsize        # resident table (single buffer)
        + 2 * tb * dim_p * itemsize         # double-buffered output tiles
        + 2 * tb * 4                        # double-buffered index tiles
        + 2 * tb * n_domains * 4            # one-hot (f32) + iota (i32) temps
        + (1 << 20)                         # slack
    )

    use_onehot = (not force_row_gather) and (vmem_needed <= resident_budget)

    if use_onehot:
        if b_p != b:
            indices = jnp.pad(indices, (0, b_p - b))  # pad with valid id 0
        vmem_limit = int(min(max(vmem_needed, 8 << 20), vmem_cap))
        out = _onehot_lookup(indices.reshape(b_p, 1), table, tb, vmem_limit)
    else:
        out = _row_gather_lookup(indices, table)
        b_p = b

    if b_p != b or dim_p != out_dim:
        out = out[:b, :out_dim]
    return out


# --------------------------------------------------------------------------- #
# Module
# --------------------------------------------------------------------------- #
class DomainEmbedding:
    """JAX/Pallas port of the PyTorch DomainEmbedding module."""

    def __init__(self, n_domains, domain_dim, key):
        # nn.Embedding default init: N(0, 1).
        w = jax.random.normal(key, (n_domains, domain_dim), dtype=jnp.float32)
        self.weight = w                          # logical (unpadded) weights
        dim_p = _round_up(domain_dim, 128)
        # Pad the feature dim ONCE at init (avoids a per-forward full-table copy).
        self.weight_padded = (
            w if dim_p == domain_dim
            else jnp.pad(w, ((0, 0), (0, dim_p - domain_dim)))
        )
        self.output_dim = domain_dim

    def forward(self, batch):
        domains = batch["domains"]
        flat = domains.reshape(-1)
        feat = domain_embedding_lookup(
            flat, self.weight_padded, out_dim=self.output_dim
        )
        feat = feat.reshape(domains.shape + (self.output_dim,))
        return {"domain-feature": feat}

    def get_output_dim(self):
        return self.output_dim


# --------------------------------------------------------------------------- #
# Self-test
# --------------------------------------------------------------------------- #
if __name__ == "__main__":
    key = jax.random.PRNGKey(0)
    k_emb, k_idx, k_emb2 = jax.random.split(key, 3)

    n_domains = 16
    domain_dim = 128
    batch_size = 40

    module = DomainEmbedding(n_domains, domain_dim, k_emb)
    domains = jax.random.randint(
        k_idx, (batch_size,), minval=0, maxval=n_domains, dtype=jnp.int32
    )
    batch = {"domains": domains}

    out = module.forward(batch)
    feat = jax.block_until_ready(out["domain-feature"])

    # Reference: plain gather, same semantics as nn.Embedding.
    ref = module.weight[domains]
    assert feat.shape == (batch_size, domain_dim)
    assert jnp.allclose(feat, ref), "mismatch vs reference gather"

    # Multi-step tiled path (tile smaller than batch, batch padding exercised).
    feat2 = jax.block_until_ready(
        domain_embedding_lookup(domains, module.weight, tb=16)
    )
    assert jnp.allclose(feat2, ref), "mismatch vs reference (tiled path)"

    # Non-multiple-of-128 feature dim (exercises the padded-column slice path).
    module96 = DomainEmbedding(8, 96, k_emb2)
    dom96 = jax.random.randint(k_idx, (12,), minval=0, maxval=8, dtype=jnp.int32)
    feat96 = jax.block_until_ready(
        module96.forward({"domains": dom96})["domain-feature"]
    )
    assert feat96.shape == (12, 96)
    assert jnp.allclose(feat96, module96.weight[dom96]), "mismatch (96-dim path)"

    # HBM-resident scalar-prefetch row-gather fallback (selected automatically
    # when the table exceeds the VMEM residency budget; forced here for testing).
    feat3 = jax.block_until_ready(
        domain_embedding_lookup(domains, module.weight, force_row_gather=True)
    )
    assert jnp.allclose(feat3, ref), "mismatch vs reference (row-gather path)"

    print("KERNEL_OK")
</pallas_src>

<mosaic_0001>
module attributes {stable_mosaic.version = 11 : i64} {
  func.func @_embedding_onehot_kernel(%arg0: i32, %arg1: memref<40x1xi32, #tpu.memory_space<vmem>>, %arg2: memref<16x128xf32, #tpu.memory_space<vmem>>, %arg3: memref<40x128xf32, #tpu.memory_space<vmem>>) attributes {dimension_semantics = [#tpu.dimension_semantics<parallel>], iteration_bounds = array<i64: 1>, scalar_prefetch = 0 : i64, scratch_operands = 0 : i64, tpu.core_type = #tpu.core_type<tc>, window_params = [{transform_indices = @transform_0, window_bounds = array<i64: 40, 1>}, {pipeline_mode = #tpu.pipeline_mode<synchronous>, transform_indices = @transform_1, window_bounds = array<i64: 16, 128>}, {transform_indices = @transform_2, window_bounds = array<i64: 40, 128>}]} {
    %c0 = arith.constant 0 : index
    %c0_0 = arith.constant 0 : index
    %0 = vector.load %arg1[%c0, %c0_0] : memref<40x1xi32, #tpu.memory_space<vmem>>, vector<40x1xi32>
    %1 = tpu.iota {dimensions = array<i32: 1>} : vector<40x16xi32>
    %2 = vector.broadcast %0 : vector<40x1xi32> to vector<40x16xi32>
    %3 = arith.cmpi eq, %1, %2 : vector<40x16xi32>
    %4 = arith.extui %3 : vector<40x16xi1> to vector<40x16xi32>
    %5 = arith.sitofp %4 : vector<40x16xi32> to vector<40x16xf32>
    %c0_1 = arith.constant 0 : index
    %c0_2 = arith.constant 0 : index
    %6 = vector.load %arg2[%c0_1, %c0_2] : memref<16x128xf32, #tpu.memory_space<vmem>>, vector<16x128xf32>
    %cst = arith.constant dense<0.000000e+00> : vector<40x128xf32>
    %7 = tpu.matmul %5, %6, %cst {dimension_numbers = #tpu.dot_dimension_numbers<[1], [0], [0], [1], [0, 0, 1, 1], [], []>} : vector<40x16xf32>, vector<16x128xf32>, vector<40x128xf32> -> vector<40x128xf32>
    %c0_3 = arith.constant 0 : index
    %c0_4 = arith.constant 0 : index
    %8 = vector.load %arg3[%c0_3, %c0_4] : memref<40x128xf32, #tpu.memory_space<vmem>>, vector<40x128xf32>
    tpu.vector_store %arg3[%c0_3, %c0_4], %7 {strides = array<i32>} : memref<40x128xf32, #tpu.memory_space<vmem>>, vector<40x128xf32>,
    return
  }
  func.func @transform_0(%arg0: i32) -> (i32, i32) {
    %c0_i32 = arith.constant 0 : i32
    %c0_i32_0 = arith.constant 0 : i32
    return %arg0, %c0_i32 : i32, i32
  }
  func.func @transform_1(%arg0: i32) -> (i32, i32) {
    %c0_i32 = arith.constant 0 : i32
    %c0_i32_0 = arith.constant 0 : i32
    %c0_i32_1 = arith.constant 0 : i32
    return %c0_i32, %c0_i32_0 : i32, i32
  }
  func.func @transform_2(%arg0: i32) -> (i32, i32) {
    %c0_i32 = arith.constant 0 : i32
    %c0_i32_0 = arith.constant 0 : i32
    return %arg0, %c0_i32 : i32, i32
  }
}

</mosaic_0001>

<llo_original>
// kernel: domain_embedding_lookup.1
$region0: #{domain_embedding_lookup.1}
  #allocation0 [shape = 'u32[]', space=smem, size = 0x4, offset = 0x4, fixed_abs, tag = 'smem constant byte address 0x4 - core index']
  #allocation1 [shape = 'u32[144,128]{1,0:T(1,128)}', space=vmem, size = 0x12000, scoped, tag = 'internal scratch']
  %s0 = inlined_call_operand.vmem [shape: s32[40,1], index: 0, kind: input, shape index: {}]
  %s1 = inlined_call_operand.vmem [shape: f32[16,128], index: 1, kind: input, shape index: {}]
  %s2 = inlined_call_operand.hbm [shape: f32[40,128], index: 2, kind: output, shape index: {}]
  %s3 = sld [smem:[#allocation0]]
  $region18: #{domain_embedding_lookup.1} parent=0
    _
  %s5 = ssub.s32 1, %s3
  %s6 = scalar_select 0, %s5, %s3
  $region1: #{domain_embedding_lookup.1} parent=0
    #allocation2 [shape = 'u8[20480]{0}', space=vmem, size = 0x5000, scoped, tag = 'output window, operand 0, single buffered']
    #allocation3 [shape = 's32[1]{0}', space=sflag, size = 0x4, scoped, tag = 'scoped memory for domain_embedding_lookup.1']
    %7 = vsyncpa [#allocation3], 0
    // Predicated region
    $region2: #{domain_embedding_lookup.1} parent=1 // pred_check
      _
    $region3: #{domain_embedding_lookup.1} parent=1 // pred_check_branch
      %9 = sbr.rel (0) target = $region5
    $region4: #{domain_embedding_lookup.1} parent=1 // pred_region
      _
    $region5: #{domain_embedding_lookup.1} parent=1 // pred_fallthru
      _
    // Predicated region
    $region6: #{domain_embedding_lookup.1} parent=1 // pred_check
      _
    $region7: #{domain_embedding_lookup.1} parent=1 // pred_check_branch
      %11 = sbr.rel (0) target = $region9
    $region8: #{domain_embedding_lookup.1} parent=1 // pred_region
      _
    $region9: #{domain_embedding_lookup.1} parent=1 // pred_fallthru
      _
    %v12 = vld [vmem:[%s0] sm:$0xff]
    %v13 = vld [vmem:[%s0 + $0x8] sm:$0xff]
    %v14 = vld [vmem:[%s0 + $0x10] sm:$0xff]
    %v15 = vld [vmem:[%s0 + $0x18] sm:$0xff]
    %v16 = vld [vmem:[%s0 + $0x20] sm:$0xff]
    %v17 = vlaneseq
    %v18 = vand.u32 %v17, 127
    %19 = vset.pattern.permute.xlu0 0
    %20 = vperm.xlu0 %19, %v12
    %v21 = vpop.permute.xlu0 %20
    %22 = vset.pattern.permute.xlu0 0
    %23 = vperm.xlu0 %22, %v13
    %v24 = vpop.permute.xlu0 %23
    %25 = vset.pattern.permute.xlu0 0
    %26 = vperm.xlu0 %25, %v14
    %v27 = vpop.permute.xlu0 %26
    %28 = vset.pattern.permute.xlu0 0
    %29 = vperm.xlu0 %28, %v15
    %v30 = vpop.permute.xlu0 %29
    %31 = vset.pattern.permute.xlu0 0
    %32 = vperm.xlu0 %31, %v16
    %v33 = vpop.permute.xlu0 %32
    %vm34 = vcmp.eq.s32.totalorder %v18, %v21
    %vm35 = vcmp.eq.s32.totalorder %v18, %v24
    %vm36 = vcmp.eq.s32.totalorder %v18, %v27
    %vm37 = vcmp.eq.s32.totalorder %v18, %v30
    %vm38 = vcmp.eq.s32.totalorder %v18, %v33
    %v39 = vsel %vm34, 1, 0
    %v40 = vsel %vm35, 1, 0
    %v41 = vsel %vm36, 1, 0
    %v42 = vsel %vm37, 1, 0
    %v43 = vsel %vm38, 1, 0
    %v44 = vcvt.s32.f32 %v39
    %v45 = vcvt.s32.f32 %v40
    %v46 = vcvt.s32.f32 %v41
    %v47 = vcvt.s32.f32 %v42
    %v48 = vcvt.s32.f32 %v43
    %v49 = vld [vmem:[%s1] sm:$0xff]
    %v50 = vld [vmem:[%s1 + $0x8] sm:$0xff]
    %vm51 = vcmask 130048
    %v53 = vsel %vm51, %v44, 0
    %v56 = vsel %vm51, %v45, 0
    %v59 = vsel %vm51, %v46, 0
    %v62 = vsel %vm51, %v47, 0
    %v65 = vsel %vm51, %v48, 0
    %67 = vmatprep.subr.mxu0 0.0
    %68 = vmatpush1.msra.mxu0 0.0
    %69 = vmatprep.subr.mxu0 0.0
    %70 = vmatpush1.msra.mxu0 0.0
    %71 = vmatprep.subr.mxu0 0.0
    %72 = vmatpush1.msra.mxu0 0.0
    %73 = vmatprep.subr.mxu0 0.0
    %74 = vmatpush1.msra.mxu0 0.0
    %75 = vmatprep.subr.mxu0 0.0
    %76 = vmatpush1.msra.mxu0 0.0
    %77 = vmatprep.subr.mxu0 0.0
    %78 = vmatpush1.msra.mxu0 0.0
    %79 = vmatprep.subr.mxu0 0.0
    %80 = vmatpush1.msra.mxu0 0.0
    %81 = vmatprep.subr.mxu0 0.0
    %82 = vmatpush1.msra.mxu0 0.0
    %83 = vmatprep.subr.mxu0 0.0
    %84 = vmatpush1.msra.mxu0 0.0
    %85 = vmatprep.subr.mxu0 0.0
    %86 = vmatpush1.msra.mxu0 0.0
    %87 = vmatprep.subr.mxu0 0.0
    %88 = vmatpush1.msra.mxu0 0.0
    %89 = vmatprep.subr.mxu0 0.0
    %90 = vmatpush1.msra.mxu0 0.0
    %91 = vmatprep.subr.mxu0 0.0
    %92 = vmatpush1.msra.mxu0 0.0
    %93 = vmatprep.subr.mxu0 0.0
    %94 = vmatpush1.msra.mxu0 0.0
    %95 = vmatprep.subr.mxu0 0.0
    %96 = vmatpush1.msra.mxu0 %v50
    %97 = vmatprep.subr.mxu0 0.0
    %98 = vmatpush1.msra.mxu0 %v49
    %99 = vmatprep.subr.mxu0 0.0
    %100 = vmatpush2.msra.mxu0 0.0
    %101 = vmatprep.subr.mxu0 0.0
    %102 = vmatpush2.msra.mxu0 0.0
    %103 = vmatprep.subr.mxu0 0.0
    %104 = vmatpush2.msra.mxu0 0.0
    %105 = vmatprep.subr.mxu0 0.0
    %106 = vmatpush2.msra.mxu0 0.0
    %107 = vmatprep.subr.mxu0 0.0
    %108 = vmatpush2.msra.mxu0 0.0
    %109 = vmatprep.subr.mxu0 0.0
    %110 = vmatpush2.msra.mxu0 0.0
    %111 = vmatprep.subr.mxu0 0.0
    %112 = vmatpush2.msra.mxu0 0.0
    %113 = vmatprep.subr.mxu0 0.0
    %114 = vmatpush2.msra.mxu0 0.0
    %115 = vmatprep.subr.mxu0 0.0
    %116 = vmatpush2.msra.mxu0 0.0
    %117 = vmatprep.subr.mxu0 0.0
    %118 = vmatpush2.msra.mxu0 0.0
    %119 = vmatprep.subr.mxu0 0.0
    %120 = vmatpush2.msra.mxu0 0.0
    %121 = vmatprep.subr.mxu0 0.0
    %122 = vmatpush2.msra.mxu0 0.0
    %123 = vmatprep.subr.mxu0 0.0
    %124 = vmatpush2.msra.mxu0 0.0
    %125 = vmatprep.subr.mxu0 0.0
    %126 = vmatpush2.msra.mxu0 0.0
    %127 = vmatprep.subr.mxu0 0.0
    %128 = vmatpush2.msra.mxu0 0.0
    %129 = vmatprep.subr.mxu0 0.0
    %130 = vmatpush2.msra.mxu0 0.0
    %131 = vmatprep.mubr.f32.mxu0 0.0
    %132 = vmatmul.mubr.f32.gmra.mxu0 %v53
    %v133 = vpop.f32.mrf.mxu0
    %v134 = vadd.f32 0.0, %v133
    %v135 = vpop.f32.mrf.mxu0
    %136 = vmatprep.mubr.f32.mxu0 0.0
    %137 = vmatmul.mubr.f32.gmra.mxu0 %v56
    %v138 = vpop.f32.mrf.mxu0
    %v139 = vadd.f32 0.0, %v138
    %v140 = vpop.f32.mrf.mxu0
    %141 = vmatprep.mubr.f32.mxu0 0.0
    %142 = vmatmul.mubr.f32.gmra.mxu0 %v59
    %v143 = vpop.f32.mrf.mxu0
    %v144 = vadd.f32 0.0, %v143
    %v145 = vpop.f32.mrf.mxu0
    %146 = vmatprep.mubr.f32.mxu0 0.0
    %147 = vmatmul.mubr.f32.gmra.mxu0 %v62
    %v148 = vpop.f32.mrf.mxu0
    %v149 = vadd.f32 0.0, %v148
    %v150 = vpop.f32.mrf.mxu0
    %151 = vmatprep.mubr.f32.mxu0 0.0
    %152 = vmatmul.mubr.f32.gmra.mxu0 %v65
    %v153 = vpop.f32.mrf.mxu0
    %v154 = vadd.f32 0.0, %v153
    %v155 = vpop.f32.mrf.mxu0
    %156 = vdwg.mxu0
    %157 = vst [vmem:[#allocation2] sm:$0xff] %v134
    %158 = vst [vmem:[#allocation2 + $0x8] sm:$0xff] %v139
    %159 = vst [vmem:[#allocation2 + $0x10] sm:$0xff] %v144
    %160 = vst [vmem:[#allocation2 + $0x18] sm:$0xff] %v149
    %161 = vst [vmem:[#allocation2 + $0x20] sm:$0xff] %v154
    // Predicated region
    $region10: #{domain_embedding_lookup.1} parent=1 // pred_check
      _
    $region11: #{domain_embedding_lookup.1} parent=1 // pred_check_branch
      %163 = sbr.rel (0) target = $region13
    $region12: #{domain_embedding_lookup.1} parent=1 // pred_region
      %s165 = ssub.s32 640, 640
      %166 = vsyncadd [#allocation3], %s165
      %s167 = sshll.u32 [#allocation2], 4
      %s168 = int_to_ptr.vmem [resolvable:$true] %s167
      %173 = dma.vmem_to_hbm [thread:$0]  %s168, 640, %s2, [#allocation3], 128, 128, 8
    $region13: #{domain_embedding_lookup.1} parent=1 // pred_fallthru
      _
    // Predicated region
    $region14: #{domain_embedding_lookup.1} parent=1 // pred_check
      _
    $region15: #{domain_embedding_lookup.1} parent=1 // pred_check_branch
      %175 = sbr.rel (0) target = $region17
    $region16: #{domain_embedding_lookup.1} parent=1 // pred_region
      %176 = dma.done [#allocation3], 640
    $region17: #{domain_embedding_lookup.1} parent=1 // pred_fallthru
      _
    %177 = vsyncpa [#allocation3], 1

</llo_original>
